<compile_context>
chip_gen: v7x
topology: tpu7x:2x2x1
jax: 0.10.0
libtpu: 0.0.40
codegen_flags: <defaults>
</compile_context>

<pallas_src>
import jax
import jax.numpy as jnp
from jax import lax
from jax.experimental import pallas as pl
from jax.experimental.pallas import tpu as pltpu

INPUT_HASH_SIZE = 4000  # MCHManagedCollisionModule(input_hash_size=4000)
LANE = 128


def _round_up(x, m):
    return ((x + m - 1) // m) * m


# ---------------------------------------------------------------------------
# Fused Pallas kernel: ZCH remap + (weighted) sum-pooled EmbeddingBags for ALL
# tables, producing the concatenated KeyedTensor values in one shot.
# ---------------------------------------------------------------------------
def _make_fused_kernel(feat_meta, L, tile_e, n_e_tiles, has_weights):
    """feat_meta: tuple of (e_size, e_f_pad, tile_idx, local_off, w_idx|None)."""
    single = (n_e_tiles == 1)

    def kernel(*refs):
        if has_weights:
            if single:
                ids_ref, lens_ref, wts_ref, tbl_ref, out_ref = refs
                hist_ref = None
            else:
                ids_ref, lens_ref, wts_ref, tbl_ref, out_ref, hist_ref = refs
        else:
            if single:
                ids_ref, lens_ref, tbl_ref, out_ref = refs
                hist_ref = None
            else:
                ids_ref, lens_ref, tbl_ref, out_ref, hist_ref = refs
            wts_ref = None

        tile_b = out_ref.shape[0]
        # Hoisted position iota shared by every feature's validity mask.
        pos = lax.broadcasted_iota(jnp.int32, (tile_b, L), 1)

        def feature_hist(f, e_size, e_f_pad, w_idx):
            ids = ids_ref[f]                                    # [tile_b, L] int32
            # MCH/ZCH remap: raw hashed id in [0, input_hash_size) -> slot [0, e_size).
            # TODO(synk): real MCHManagedCollisionModule keeps learned id->slot state
            # with DistanceLFU eviction; modeled here as a stateless modulo remap.
            if e_size & (e_size - 1) == 0:
                rid = ids & (e_size - 1)                        # power-of-two: cheap AND
            else:
                rid = ids % e_size

            valid = pos < lens_ref[:, f:f + 1]                  # [tile_b, L] bool
            if w_idx is None:
                w = valid.astype(jnp.float32)                   # plain sum pooling
            else:
                w = jnp.where(valid, wts_ref[w_idx], 0.0)       # weighted sum pooling

            # 2-D streaming histogram over this feature's own (128-padded) row
            # span only: unrolled over L, no 3-D temp, no sublane reduce.
            # TODO(synk): O(B*L*E_f) one-hot; for realistically large tables switch
            # to a manual DMA row-gather (pl.ANY table + pltpu.make_async_copy).
            iota_f = lax.broadcasted_iota(jnp.int32, (tile_b, e_f_pad), 1)
            hist_f = jnp.zeros((tile_b, e_f_pad), jnp.float32)
            for l in range(L):
                hit = rid[:, l:l + 1] == iota_f                 # [tile_b, e_f_pad]
                hist_f = hist_f + jnp.where(hit, w[:, l:l + 1], 0.0)
            return hist_f

        if single:
            # Single E-tile: build the whole histogram as a lane-concatenated
            # value (feature spans are disjoint, 128-aligned) and write the
            # output block directly with one f32 MXU matmul.
            parts = []
            cur = 0
            for f, (e_size, e_f_pad, _tile_idx, local_off, w_idx) in enumerate(feat_meta):
                if local_off > cur:
                    parts.append(jnp.zeros((tile_b, local_off - cur), jnp.float32))
                parts.append(feature_hist(f, e_size, e_f_pad, w_idx))
                cur = local_off + e_f_pad
            if cur < tile_e:
                parts.append(jnp.zeros((tile_b, tile_e - cur), jnp.float32))
            hist = parts[0] if len(parts) == 1 else jnp.concatenate(parts, axis=1)
            out_ref[...] = jnp.dot(hist, tbl_ref[...],
                                   preferred_element_type=jnp.float32)
        else:
            k = pl.program_id(1)  # E-tile (reduction) axis

            @pl.when(k == 0)
            def _():
                out_ref[...] = jnp.zeros_like(out_ref)

            # Fresh histogram for this E-tile (pad columns hit zero table rows,
            # but must not carry NaN/stale data from previous tiles).
            hist_ref[...] = jnp.zeros_like(hist_ref)

            for f, (e_size, e_f_pad, tile_idx, local_off, w_idx) in enumerate(feat_meta):
                # Static feature->tile assignment: skip all VPU work for
                # features that cannot hit this E-tile.
                @pl.when(k == tile_idx)
                def _(f=f, e_size=e_size, e_f_pad=e_f_pad,
                      local_off=local_off, w_idx=w_idx):
                    hist_ref[:, local_off:local_off + e_f_pad] = feature_hist(
                        f, e_size, e_f_pad, w_idx)

            out_ref[...] += jnp.dot(hist_ref[...], tbl_ref[...],
                                    preferred_element_type=jnp.float32)

    return kernel


def fused_ebag_pool(ids_packed, lens_packed, wts_packed, fused_table, feat_meta,
                    *, tile_e):
    """One pallas_call producing the pooled [B, D_pad] slab for all tables."""
    T, B, L = ids_packed.shape
    E_pad, D_pad = fused_table.shape
    n_e_tiles = E_pad // tile_e
    has_weights = wts_packed is not None

    # Batch tiling: 256 rows feeds v6e/v7x's 256-wide MXU; 128 matches v5e's
    # MXU; small batches use one padded tile. Last tile is zero-padded
    # (lengths=0 rows contribute nothing) instead of falling back to tile_b=B.
    if B >= 512:
        tile_b = 256
    elif B >= 128:
        tile_b = 128
    else:
        tile_b = _round_up(B, 8)
    n_b_tiles = pl.cdiv(B, tile_b)
    B_pad = n_b_tiles * tile_b
    if B_pad != B:
        ids_packed = jnp.pad(ids_packed, ((0, 0), (0, B_pad - B), (0, 0)))
        lens_packed = jnp.pad(lens_packed, ((0, B_pad - B), (0, 0)))
        if has_weights:
            wts_packed = jnp.pad(wts_packed, ((0, 0), (0, B_pad - B), (0, 0)))

    single = (n_e_tiles == 1)
    if single:
        grid = (n_b_tiles,)
        dims = ("parallel",)
        im_ids = lambda i: (0, i, 0)
        im_lens = lambda i: (i, 0)
        im_tbl = lambda i: (0, 0)
        im_out = lambda i: (i, 0)
    else:
        # TODO(synk): on v7x with a single batch tile, add a second "parallel"
        # grid axis over feature groups so the second TensorCore gets work.
        grid = (n_b_tiles, n_e_tiles)
        dims = ("parallel", "arbitrary")
        im_ids = lambda i, k: (0, i, 0)
        im_lens = lambda i, k: (i, 0)
        im_tbl = lambda i, k: (k, 0)
        im_out = lambda i, k: (i, 0)

    in_specs = [
        pl.BlockSpec((T, tile_b, L), im_ids),        # ids
        pl.BlockSpec((tile_b, T), im_lens),          # lengths
    ]
    args = [ids_packed, lens_packed]
    if has_weights:
        Tw = wts_packed.shape[0]
        in_specs.append(pl.BlockSpec((Tw, tile_b, L), im_ids))
        args.append(wts_packed)
    in_specs.append(pl.BlockSpec((tile_e, D_pad), im_tbl))   # fused table
    args.append(fused_table)

    scratch = [] if single else [pltpu.VMEM((tile_b, tile_e), jnp.float32)]

    kernel = _make_fused_kernel(tuple(feat_meta), L, tile_e, n_e_tiles, has_weights)

    # Explicit VMEM budget (double-buffered inputs/output + hist scratch),
    # with headroom, capped at 64 MiB so the same choice is safe on v7x.
    bytes_needed = 2 * (T * tile_b * L * 4 + tile_b * T * 4
                        + tile_e * D_pad * 4 + tile_b * D_pad * 4)
    if has_weights:
        bytes_needed += 2 * wts_packed.shape[0] * tile_b * L * 4
    if not single:
        bytes_needed += tile_b * tile_e * 4
    vmem_limit = min(64 << 20, max(32 << 20, 2 * bytes_needed))

    out = pl.pallas_call(
        kernel,
        out_shape=jax.ShapeDtypeStruct((B_pad, D_pad), jnp.float32),
        grid=grid,
        in_specs=in_specs,
        out_specs=pl.BlockSpec((tile_b, D_pad), im_out),
        scratch_shapes=scratch,
        compiler_params=pltpu.CompilerParams(
            dimension_semantics=dims,
            vmem_limit_bytes=vmem_limit),
    )(*args)
    return out[:B] if B_pad != B else out


# ---------------------------------------------------------------------------
# Glue: module-equivalent wrapper
# ---------------------------------------------------------------------------
def _post_sparsenn_forward(values, batch_size=None):
    """Mirror of torchrec's _post_sparsenn_forward (values path, fp_ebc=None).

    The unweighted/weighted concat happens inside the fused kernel (the fused
    table lays the feature dims out along dim 1 in key order), so only the
    optional zero-pad-to-batch_size remains here.
    """
    if batch_size is None or values.shape[0] == batch_size:
        return values
    padded = jnp.zeros((batch_size, values.shape[1]), values.dtype)
    return padded.at[:values.shape[0], :].set(values)


class TestSparseArchZCH:
    """JAX/Pallas equivalent of torchrec TestSparseArchZCH forward pass.

    tables / weighted_tables: list of dicts with keys
        name, feature_name, num_embeddings, embedding_dim
    """

    def __init__(self, tables, weighted_tables, key):
        self.tables = list(tables)
        self.weighted_tables = list(weighted_tables)
        all_tables = self.tables + self.weighted_tables

        # Per-table base params (f32 master copies).
        self.params = {}
        k = key
        for t in all_tables:
            k, sub = jax.random.split(k)
            self.params[t["name"]] = (
                jax.random.normal(sub, (t["num_embeddings"], t["embedding_dim"]),
                                  dtype=jnp.float32) * 0.1)

        # Fused table: rows = concatenated (128-aligned) ZCH id spaces, columns
        # = concatenated embedding dims (KeyedTensor order), padded to a
        # lane-dense multiple of 128 so kernel output stores are unmasked.
        # TODO(synk): block-diagonal zeros waste O(E_total x D_total) at scale;
        # for realistic table counts group by embedding_dim or DMA row-gather.
        e_f_pads = [_round_up(t["num_embeddings"], LANE) for t in all_tables]
        d_sizes = [t["embedding_dim"] for t in all_tables]
        self.d_total = sum(d_sizes)
        d_pad = _round_up(self.d_total, LANE)

        total_ef = sum(e_f_pads)
        max_ef = max(e_f_pads)
        # tile_e: multiple of 128, big enough to hold any single feature; use a
        # single E-tile when the whole (padded) row space is modest.
        if total_ef <= 2048:
            tile_e = total_ef
        else:
            tile_e = max(512, max_ef)
        self.tile_e = tile_e

        # Allocate 128-aligned row offsets; bump to the next tile boundary if a
        # feature would straddle an E-tile so each feature lives in exactly one
        # tile (static tile index -> cheap pl.when skip in the kernel).
        self.feat_meta = []   # (e_size, e_f_pad, tile_idx, local_off, w_idx)
        self.keys = []
        row_offsets = []
        n_unweighted = len(self.tables)
        e_off = 0
        for idx, (t, efp) in enumerate(zip(all_tables, e_f_pads)):
            if (e_off % tile_e) + efp > tile_e:
                e_off = _round_up(e_off, tile_e)
            tile_idx = e_off // tile_e
            local_off = e_off % tile_e
            w_idx = None if idx < n_unweighted else idx - n_unweighted
            self.feat_meta.append((t["num_embeddings"], efp, tile_idx, local_off, w_idx))
            self.keys.append(t["feature_name"])
            row_offsets.append(e_off)
            e_off += efp
        e_pad = _round_up(e_off, tile_e)

        big = jnp.zeros((e_pad, d_pad), jnp.float32)
        d_off = 0
        for row_off, t in zip(row_offsets, all_tables):
            E, D = t["num_embeddings"], t["embedding_dim"]
            big = big.at[row_off:row_off + E, d_off:d_off + D].set(self.params[t["name"]])
            d_off += D
        # Keep the table in f32: the MXU has large slack vs the VPU histogram
        # here, and f32 keeps exact parity with the f32 torch reference.
        self.fused_table = big

    def __call__(self, features, weighted_features=None, batch_size=None):
        # features: {feature_name: (ids[B,L] int32, lengths[B] int32)}
        # weighted_features: {feature_name: (ids, lengths, weights[B,L] f32)}
        # Assumes weighted_features is provided whenever weighted tables exist
        # (as in the torchrec test forward), and that all features share B, L.
        ids_list, lens_list, wts_list = [], [], []
        for t in self.tables:
            ids, lengths = features[t["feature_name"]]
            ids_list.append(ids.astype(jnp.int32))
            lens_list.append(lengths.astype(jnp.int32))
        for t in self.weighted_tables:
            ids, lengths, wts = weighted_features[t["feature_name"]]
            ids_list.append(ids.astype(jnp.int32))
            lens_list.append(lengths.astype(jnp.int32))
            wts_list.append(wts.astype(jnp.float32))

        ids_packed = jnp.stack(ids_list, axis=0)                 # [T, B, L]
        lens_packed = jnp.stack(lens_list, axis=1)               # [B, T]
        wts_packed = jnp.stack(wts_list, axis=0) if wts_list else None

        out_pad = fused_ebag_pool(ids_packed, lens_packed, wts_packed,
                                  self.fused_table, self.feat_meta,
                                  tile_e=self.tile_e)            # [B, D_pad]
        values = out_pad[:, :self.d_total]                       # [B, sum(D)]
        values = _post_sparsenn_forward(values, batch_size)
        return {"keys": list(self.keys), "values": values}


# ---------------------------------------------------------------------------
# Main
# ---------------------------------------------------------------------------
if __name__ == "__main__":
    B, L = 8, 8
    tables = [
        {"name": "table_0", "feature_name": "feature_0",
         "num_embeddings": 128, "embedding_dim": 16},
        {"name": "table_1", "feature_name": "feature_1",
         "num_embeddings": 256, "embedding_dim": 32},
    ]
    weighted_tables = [
        {"name": "weighted_table_0", "feature_name": "weighted_feature_0",
         "num_embeddings": 128, "embedding_dim": 16},
    ]

    key = jax.random.PRNGKey(0)
    k_model, k_data = jax.random.split(key)
    model = TestSparseArchZCH(tables, weighted_tables, k_model)

    def make_feature(k, weighted=False):
        k1, k2, k3 = jax.random.split(k, 3)
        ids = jax.random.randint(k1, (B, L), 0, INPUT_HASH_SIZE, dtype=jnp.int32)
        lengths = jax.random.randint(k2, (B,), 1, L + 1, dtype=jnp.int32)
        if weighted:
            wts = jax.random.uniform(k3, (B, L), dtype=jnp.float32)
            return ids, lengths, wts
        return ids, lengths

    kf0, kf1, kw0 = jax.random.split(k_data, 3)
    features = {
        "feature_0": make_feature(kf0),
        "feature_1": make_feature(kf1),
    }
    weighted_features = {
        "weighted_feature_0": make_feature(kw0, weighted=True),
    }

    out = model(features, weighted_features, batch_size=B)
    values = jax.block_until_ready(out["values"])
    expected_dim = sum(t["embedding_dim"] for t in tables + weighted_tables)
    assert values.shape == (B, expected_dim), values.shape
    assert values.dtype == jnp.float32
    assert bool(jnp.all(jnp.isfinite(values)))
    print("KERNEL_OK")
</pallas_src>

<mosaic_0001>
module attributes {stable_mosaic.version = 11 : i64} {
  func.func @kernel(%arg0: i32, %arg1: memref<3x8x8xi32, #tpu.memory_space<vmem>>, %arg2: memref<8x3xi32, #tpu.memory_space<vmem>>, %arg3: memref<1x8x8xf32, #tpu.memory_space<vmem>>, %arg4: memref<512x128xf32, #tpu.memory_space<vmem>>, %arg5: memref<8x128xf32, #tpu.memory_space<vmem>>) attributes {dimension_semantics = [#tpu.dimension_semantics<parallel>], iteration_bounds = array<i64: 1>, scalar_prefetch = 0 : i64, scratch_operands = 0 : i64, tpu.core_type = #tpu.core_type<tc>, window_params = [{transform_indices = @transform_0, window_bounds = array<i64: 3, 8, 8>}, {transform_indices = @transform_1, window_bounds = array<i64: 8, 3>}, {transform_indices = @transform_2, window_bounds = array<i64: 1, 8, 8>}, {pipeline_mode = #tpu.pipeline_mode<synchronous>, transform_indices = @transform_3, window_bounds = array<i64: 512, 128>}, {transform_indices = @transform_4, window_bounds = array<i64: 8, 128>}]} {
    %0 = tpu.iota {dimensions = array<i32: 1>} : vector<8x8xi32>
    %c0 = arith.constant 0 : index
    %c0_0 = arith.constant 0 : index
    %c0_1 = arith.constant 0 : index
    %1 = vector.load %arg1[%c0, %c0_0, %c0_1] : memref<3x8x8xi32, #tpu.memory_space<vmem>>, vector<1x8x8xi32>
    %2 = vector.shape_cast %1 : vector<1x8x8xi32> to vector<8x8xi32>
    %c127_i32 = arith.constant 127 : i32
    %3 = vector.broadcast %c127_i32 : i32 to vector<8x8xi32>
    %4 = arith.andi %2, %3 : vector<8x8xi32>
    %c0_2 = arith.constant 0 : index
    %c0_3 = arith.constant 0 : index
    %5 = vector.load %arg2[%c0_2, %c0_3] : memref<8x3xi32, #tpu.memory_space<vmem>>, vector<8x1xi32>
    %6 = vector.broadcast %5 : vector<8x1xi32> to vector<8x8xi32>
    %7 = arith.cmpi slt, %0, %6 : vector<8x8xi32>
    %8 = arith.extui %7 : vector<8x8xi1> to vector<8x8xi32>
    %9 = arith.sitofp %8 : vector<8x8xi32> to vector<8x8xf32>
    %10 = tpu.iota {dimensions = array<i32: 1>} : vector<8x128xi32>
    %cst = arith.constant 0.000000e+00 : f32
    %11 = vector.broadcast %cst : f32 to vector<8x128xf32>
    %12 = vector.extract_strided_slice %4 {offsets = [0, 0], sizes = [8, 1], strides = [1, 1]} : vector<8x8xi32> to vector<8x1xi32>
    %13 = vector.broadcast %12 : vector<8x1xi32> to vector<8x128xi32>
    %14 = arith.cmpi eq, %13, %10 : vector<8x128xi32>
    %15 = vector.extract_strided_slice %9 {offsets = [0, 0], sizes = [8, 1], strides = [1, 1]} : vector<8x8xf32> to vector<8x1xf32>
    %cst_4 = arith.constant 0.000000e+00 : f32
    %16 = vector.shape_cast %15 : vector<8x1xf32> to vector<8x1xf32>
    %17 = vector.broadcast %16 : vector<8x1xf32> to vector<8x128xf32>
    %18 = vector.broadcast %cst_4 : f32 to vector<8x128xf32>
    %19 = arith.select %14, %17, %18 : vector<8x128xi1>, vector<8x128xf32>
    %20 = arith.addf %11, %19 : vector<8x128xf32>
    %21 = vector.extract_strided_slice %4 {offsets = [0, 1], sizes = [8, 1], strides = [1, 1]} : vector<8x8xi32> to vector<8x1xi32>
    %22 = vector.broadcast %21 : vector<8x1xi32> to vector<8x128xi32>
    %23 = arith.cmpi eq, %22, %10 : vector<8x128xi32>
    %24 = vector.extract_strided_slice %9 {offsets = [0, 1], sizes = [8, 1], strides = [1, 1]} : vector<8x8xf32> to vector<8x1xf32>
    %cst_5 = arith.constant 0.000000e+00 : f32
    %25 = vector.shape_cast %24 : vector<8x1xf32> to vector<8x1xf32>
    %26 = vector.broadcast %25 : vector<8x1xf32> to vector<8x128xf32>
    %27 = vector.broadcast %cst_5 : f32 to vector<8x128xf32>
    %28 = arith.select %23, %26, %27 : vector<8x128xi1>, vector<8x128xf32>
    %29 = arith.addf %20, %28 : vector<8x128xf32>
    %30 = vector.extract_strided_slice %4 {offsets = [0, 2], sizes = [8, 1], strides = [1, 1]} : vector<8x8xi32> to vector<8x1xi32>
    %31 = vector.broadcast %30 : vector<8x1xi32> to vector<8x128xi32>
    %32 = arith.cmpi eq, %31, %10 : vector<8x128xi32>
    %33 = vector.extract_strided_slice %9 {offsets = [0, 2], sizes = [8, 1], strides = [1, 1]} : vector<8x8xf32> to vector<8x1xf32>
    %cst_6 = arith.constant 0.000000e+00 : f32
    %34 = vector.shape_cast %33 : vector<8x1xf32> to vector<8x1xf32>
    %35 = vector.broadcast %34 : vector<8x1xf32> to vector<8x128xf32>
    %36 = vector.broadcast %cst_6 : f32 to vector<8x128xf32>
    %37 = arith.select %32, %35, %36 : vector<8x128xi1>, vector<8x128xf32>
    %38 = arith.addf %29, %37 : vector<8x128xf32>
    %39 = vector.extract_strided_slice %4 {offsets = [0, 3], sizes = [8, 1], strides = [1, 1]} : vector<8x8xi32> to vector<8x1xi32>
    %40 = vector.broadcast %39 : vector<8x1xi32> to vector<8x128xi32>
    %41 = arith.cmpi eq, %40, %10 : vector<8x128xi32>
    %42 = vector.extract_strided_slice %9 {offsets = [0, 3], sizes = [8, 1], strides = [1, 1]} : vector<8x8xf32> to vector<8x1xf32>
    %cst_7 = arith.constant 0.000000e+00 : f32
    %43 = vector.shape_cast %42 : vector<8x1xf32> to vector<8x1xf32>
    %44 = vector.broadcast %43 : vector<8x1xf32> to vector<8x128xf32>
    %45 = vector.broadcast %cst_7 : f32 to vector<8x128xf32>
    %46 = arith.select %41, %44, %45 : vector<8x128xi1>, vector<8x128xf32>
    %47 = arith.addf %38, %46 : vector<8x128xf32>
    %48 = vector.extract_strided_slice %4 {offsets = [0, 4], sizes = [8, 1], strides = [1, 1]} : vector<8x8xi32> to vector<8x1xi32>
    %49 = vector.broadcast %48 : vector<8x1xi32> to vector<8x128xi32>
    %50 = arith.cmpi eq, %49, %10 : vector<8x128xi32>
    %51 = vector.extract_strided_slice %9 {offsets = [0, 4], sizes = [8, 1], strides = [1, 1]} : vector<8x8xf32> to vector<8x1xf32>
    %cst_8 = arith.constant 0.000000e+00 : f32
    %52 = vector.shape_cast %51 : vector<8x1xf32> to vector<8x1xf32>
    %53 = vector.broadcast %52 : vector<8x1xf32> to vector<8x128xf32>
    %54 = vector.broadcast %cst_8 : f32 to vector<8x128xf32>
    %55 = arith.select %50, %53, %54 : vector<8x128xi1>, vector<8x128xf32>
    %56 = arith.addf %47, %55 : vector<8x128xf32>
    %57 = vector.extract_strided_slice %4 {offsets = [0, 5], sizes = [8, 1], strides = [1, 1]} : vector<8x8xi32> to vector<8x1xi32>
    %58 = vector.broadcast %57 : vector<8x1xi32> to vector<8x128xi32>
    %59 = arith.cmpi eq, %58, %10 : vector<8x128xi32>
    %60 = vector.extract_strided_slice %9 {offsets = [0, 5], sizes = [8, 1], strides = [1, 1]} : vector<8x8xf32> to vector<8x1xf32>
    %cst_9 = arith.constant 0.000000e+00 : f32
    %61 = vector.shape_cast %60 : vector<8x1xf32> to vector<8x1xf32>
    %62 = vector.broadcast %61 : vector<8x1xf32> to vector<8x128xf32>
    %63 = vector.broadcast %cst_9 : f32 to vector<8x128xf32>
    %64 = arith.select %59, %62, %63 : vector<8x128xi1>, vector<8x128xf32>
    %65 = arith.addf %56, %64 : vector<8x128xf32>
    %66 = vector.extract_strided_slice %4 {offsets = [0, 6], sizes = [8, 1], strides = [1, 1]} : vector<8x8xi32> to vector<8x1xi32>
    %67 = vector.broadcast %66 : vector<8x1xi32> to vector<8x128xi32>
    %68 = arith.cmpi eq, %67, %10 : vector<8x128xi32>
    %69 = vector.extract_strided_slice %9 {offsets = [0, 6], sizes = [8, 1], strides = [1, 1]} : vector<8x8xf32> to vector<8x1xf32>
    %cst_10 = arith.constant 0.000000e+00 : f32
    %70 = vector.shape_cast %69 : vector<8x1xf32> to vector<8x1xf32>
    %71 = vector.broadcast %70 : vector<8x1xf32> to vector<8x128xf32>
    %72 = vector.broadcast %cst_10 : f32 to vector<8x128xf32>
    %73 = arith.select %68, %71, %72 : vector<8x128xi1>, vector<8x128xf32>
    %74 = arith.addf %65, %73 : vector<8x128xf32>
    %75 = vector.extract_strided_slice %4 {offsets = [0, 7], sizes = [8, 1], strides = [1, 1]} : vector<8x8xi32> to vector<8x1xi32>
    %76 = vector.broadcast %75 : vector<8x1xi32> to vector<8x128xi32>
    %77 = arith.cmpi eq, %76, %10 : vector<8x128xi32>
    %78 = vector.extract_strided_slice %9 {offsets = [0, 7], sizes = [8, 1], strides = [1, 1]} : vector<8x8xf32> to vector<8x1xf32>
    %cst_11 = arith.constant 0.000000e+00 : f32
    %79 = vector.shape_cast %78 : vector<8x1xf32> to vector<8x1xf32>
    %80 = vector.broadcast %79 : vector<8x1xf32> to vector<8x128xf32>
    %81 = vector.broadcast %cst_11 : f32 to vector<8x128xf32>
    %82 = arith.select %77, %80, %81 : vector<8x128xi1>, vector<8x128xf32>
    %83 = arith.addf %74, %82 : vector<8x128xf32>
    %c1 = arith.constant 1 : index
    %c0_12 = arith.constant 0 : index
    %c0_13 = arith.constant 0 : index
    %84 = vector.load %arg1[%c1, %c0_12, %c0_13] : memref<3x8x8xi32, #tpu.memory_space<vmem>>, vector<1x8x8xi32>
    %85 = vector.shape_cast %84 : vector<1x8x8xi32> to vector<8x8xi32>
    %c255_i32 = arith.constant 255 : i32
    %86 = vector.broadcast %c255_i32 : i32 to vector<8x8xi32>
    %87 = arith.andi %85, %86 : vector<8x8xi32>
    %c0_14 = arith.constant 0 : index
    %c1_15 = arith.constant 1 : index
    %88 = vector.load %arg2[%c0_14, %c1_15] : memref<8x3xi32, #tpu.memory_space<vmem>>, vector<8x1xi32>
    %89 = vector.broadcast %88 : vector<8x1xi32> to vector<8x8xi32>
    %90 = arith.cmpi slt, %0, %89 : vector<8x8xi32>
    %91 = arith.extui %90 : vector<8x8xi1> to vector<8x8xi32>
    %92 = arith.sitofp %91 : vector<8x8xi32> to vector<8x8xf32>
    %93 = tpu.iota {dimensions = array<i32: 1>} : vector<8x256xi32>
    %cst_16 = arith.constant 0.000000e+00 : f32
    %94 = vector.broadcast %cst_16 : f32 to vector<8x256xf32>
    %95 = vector.extract_strided_slice %87 {offsets = [0, 0], sizes = [8, 1], strides = [1, 1]} : vector<8x8xi32> to vector<8x1xi32>
    %96 = vector.broadcast %95 : vector<8x1xi32> to vector<8x256xi32>
    %97 = arith.cmpi eq, %96, %93 : vector<8x256xi32>
    %98 = vector.extract_strided_slice %92 {offsets = [0, 0], sizes = [8, 1], strides = [1, 1]} : vector<8x8xf32> to vector<8x1xf32>
    %cst_17 = arith.constant 0.000000e+00 : f32
    %99 = vector.shape_cast %98 : vector<8x1xf32> to vector<8x1xf32>
    %100 = vector.broadcast %99 : vector<8x1xf32> to vector<8x256xf32>
    %101 = vector.broadcast %cst_17 : f32 to vector<8x256xf32>
    %102 = arith.select %97, %100, %101 : vector<8x256xi1>, vector<8x256xf32>
    %103 = arith.addf %94, %102 : vector<8x256xf32>
    %104 = vector.extract_strided_slice %87 {offsets = [0, 1], sizes = [8, 1], strides = [1, 1]} : vector<8x8xi32> to vector<8x1xi32>
    %105 = vector.broadcast %104 : vector<8x1xi32> to vector<8x256xi32>
    %106 = arith.cmpi eq, %105, %93 : vector<8x256xi32>
    %107 = vector.extract_strided_slice %92 {offsets = [0, 1], sizes = [8, 1], strides = [1, 1]} : vector<8x8xf32> to vector<8x1xf32>
    %cst_18 = arith.constant 0.000000e+00 : f32
    %108 = vector.shape_cast %107 : vector<8x1xf32> to vector<8x1xf32>
    %109 = vector.broadcast %108 : vector<8x1xf32> to vector<8x256xf32>
    %110 = vector.broadcast %cst_18 : f32 to vector<8x256xf32>
    %111 = arith.select %106, %109, %110 : vector<8x256xi1>, vector<8x256xf32>
    %112 = arith.addf %103, %111 : vector<8x256xf32>
    %113 = vector.extract_strided_slice %87 {offsets = [0, 2], sizes = [8, 1], strides = [1, 1]} : vector<8x8xi32> to vector<8x1xi32>
    %114 = vector.broadcast %113 : vector<8x1xi32> to vector<8x256xi32>
    %115 = arith.cmpi eq, %114, %93 : vector<8x256xi32>
    %116 = vector.extract_strided_slice %92 {offsets = [0, 2], sizes = [8, 1], strides = [1, 1]} : vector<8x8xf32> to vector<8x1xf32>
    %cst_19 = arith.constant 0.000000e+00 : f32
    %117 = vector.shape_cast %116 : vector<8x1xf32> to vector<8x1xf32>
    %118 = vector.broadcast %117 : vector<8x1xf32> to vector<8x256xf32>
    %119 = vector.broadcast %cst_19 : f32 to vector<8x256xf32>
    %120 = arith.select %115, %118, %119 : vector<8x256xi1>, vector<8x256xf32>
    %121 = arith.addf %112, %120 : vector<8x256xf32>
    %122 = vector.extract_strided_slice %87 {offsets = [0, 3], sizes = [8, 1], strides = [1, 1]} : vector<8x8xi32> to vector<8x1xi32>
    %123 = vector.broadcast %122 : vector<8x1xi32> to vector<8x256xi32>
    %124 = arith.cmpi eq, %123, %93 : vector<8x256xi32>
    %125 = vector.extract_strided_slice %92 {offsets = [0, 3], sizes = [8, 1], strides = [1, 1]} : vector<8x8xf32> to vector<8x1xf32>
    %cst_20 = arith.constant 0.000000e+00 : f32
    %126 = vector.shape_cast %125 : vector<8x1xf32> to vector<8x1xf32>
    %127 = vector.broadcast %126 : vector<8x1xf32> to vector<8x256xf32>
    %128 = vector.broadcast %cst_20 : f32 to vector<8x256xf32>
    %129 = arith.select %124, %127, %128 : vector<8x256xi1>, vector<8x256xf32>
    %130 = arith.addf %121, %129 : vector<8x256xf32>
    %131 = vector.extract_strided_slice %87 {offsets = [0, 4], sizes = [8, 1], strides = [1, 1]} : vector<8x8xi32> to vector<8x1xi32>
    %132 = vector.broadcast %131 : vector<8x1xi32> to vector<8x256xi32>
    %133 = arith.cmpi eq, %132, %93 : vector<8x256xi32>
    %134 = vector.extract_strided_slice %92 {offsets = [0, 4], sizes = [8, 1], strides = [1, 1]} : vector<8x8xf32> to vector<8x1xf32>
    %cst_21 = arith.constant 0.000000e+00 : f32
    %135 = vector.shape_cast %134 : vector<8x1xf32> to vector<8x1xf32>
    %136 = vector.broadcast %135 : vector<8x1xf32> to vector<8x256xf32>
    %137 = vector.broadcast %cst_21 : f32 to vector<8x256xf32>
    %138 = arith.select %133, %136, %137 : vector<8x256xi1>, vector<8x256xf32>
    %139 = arith.addf %130, %138 : vector<8x256xf32>
    %140 = vector.extract_strided_slice %87 {offsets = [0, 5], sizes = [8, 1], strides = [1, 1]} : vector<8x8xi32> to vector<8x1xi32>
    %141 = vector.broadcast %140 : vector<8x1xi32> to vector<8x256xi32>
    %142 = arith.cmpi eq, %141, %93 : vector<8x256xi32>
    %143 = vector.extract_strided_slice %92 {offsets = [0, 5], sizes = [8, 1], strides = [1, 1]} : vector<8x8xf32> to vector<8x1xf32>
    %cst_22 = arith.constant 0.000000e+00 : f32
    %144 = vector.shape_cast %143 : vector<8x1xf32> to vector<8x1xf32>
    %145 = vector.broadcast %144 : vector<8x1xf32> to vector<8x256xf32>
    %146 = vector.broadcast %cst_22 : f32 to vector<8x256xf32>
    %147 = arith.select %142, %145, %146 : vector<8x256xi1>, vector<8x256xf32>
    %148 = arith.addf %139, %147 : vector<8x256xf32>
    %149 = vector.extract_strided_slice %87 {offsets = [0, 6], sizes = [8, 1], strides = [1, 1]} : vector<8x8xi32> to vector<8x1xi32>
    %150 = vector.broadcast %149 : vector<8x1xi32> to vector<8x256xi32>
    %151 = arith.cmpi eq, %150, %93 : vector<8x256xi32>
    %152 = vector.extract_strided_slice %92 {offsets = [0, 6], sizes = [8, 1], strides = [1, 1]} : vector<8x8xf32> to vector<8x1xf32>
    %cst_23 = arith.constant 0.000000e+00 : f32
    %153 = vector.shape_cast %152 : vector<8x1xf32> to vector<8x1xf32>
    %154 = vector.broadcast %153 : vector<8x1xf32> to vector<8x256xf32>
    %155 = vector.broadcast %cst_23 : f32 to vector<8x256xf32>
    %156 = arith.select %151, %154, %155 : vector<8x256xi1>, vector<8x256xf32>
    %157 = arith.addf %148, %156 : vector<8x256xf32>
    %158 = vector.extract_strided_slice %87 {offsets = [0, 7], sizes = [8, 1], strides = [1, 1]} : vector<8x8xi32> to vector<8x1xi32>
    %159 = vector.broadcast %158 : vector<8x1xi32> to vector<8x256xi32>
    %160 = arith.cmpi eq, %159, %93 : vector<8x256xi32>
    %161 = vector.extract_strided_slice %92 {offsets = [0, 7], sizes = [8, 1], strides = [1, 1]} : vector<8x8xf32> to vector<8x1xf32>
    %cst_24 = arith.constant 0.000000e+00 : f32
    %162 = vector.shape_cast %161 : vector<8x1xf32> to vector<8x1xf32>
    %163 = vector.broadcast %162 : vector<8x1xf32> to vector<8x256xf32>
    %164 = vector.broadcast %cst_24 : f32 to vector<8x256xf32>
    %165 = arith.select %160, %163, %164 : vector<8x256xi1>, vector<8x256xf32>
    %166 = arith.addf %157, %165 : vector<8x256xf32>
    %c2 = arith.constant 2 : index
    %c0_25 = arith.constant 0 : index
    %c0_26 = arith.constant 0 : index
    %167 = vector.load %arg1[%c2, %c0_25, %c0_26] : memref<3x8x8xi32, #tpu.memory_space<vmem>>, vector<1x8x8xi32>
    %168 = vector.shape_cast %167 : vector<1x8x8xi32> to vector<8x8xi32>
    %c127_i32_27 = arith.constant 127 : i32
    %169 = vector.broadcast %c127_i32_27 : i32 to vector<8x8xi32>
    %170 = arith.andi %168, %169 : vector<8x8xi32>
    %c0_28 = arith.constant 0 : index
    %c2_29 = arith.constant 2 : index
    %171 = vector.load %arg2[%c0_28, %c2_29] : memref<8x3xi32, #tpu.memory_space<vmem>>, vector<8x1xi32>
    %172 = vector.broadcast %171 : vector<8x1xi32> to vector<8x8xi32>
    %173 = arith.cmpi slt, %0, %172 : vector<8x8xi32>
    %c0_30 = arith.constant 0 : index
    %c0_31 = arith.constant 0 : index
    %c0_32 = arith.constant 0 : index
    %174 = vector.load %arg3[%c0_30, %c0_31, %c0_32] : memref<1x8x8xf32, #tpu.memory_space<vmem>>, vector<1x8x8xf32>
    %175 = vector.shape_cast %174 : vector<1x8x8xf32> to vector<8x8xf32>
    %cst_33 = arith.constant 0.000000e+00 : f32
    %176 = vector.broadcast %cst_33 : f32 to vector<8x8xf32>
    %177 = arith.select %173, %175, %176 : vector<8x8xi1>, vector<8x8xf32>
    %178 = tpu.iota {dimensions = array<i32: 1>} : vector<8x128xi32>
    %cst_34 = arith.constant 0.000000e+00 : f32
    %179 = vector.broadcast %cst_34 : f32 to vector<8x128xf32>
    %180 = vector.extract_strided_slice %170 {offsets = [0, 0], sizes = [8, 1], strides = [1, 1]} : vector<8x8xi32> to vector<8x1xi32>
    %181 = vector.broadcast %180 : vector<8x1xi32> to vector<8x128xi32>
    %182 = arith.cmpi eq, %181, %178 : vector<8x128xi32>
    %183 = vector.extract_strided_slice %177 {offsets = [0, 0], sizes = [8, 1], strides = [1, 1]} : vector<8x8xf32> to vector<8x1xf32>
    %cst_35 = arith.constant 0.000000e+00 : f32
    %184 = vector.shape_cast %183 : vector<8x1xf32> to vector<8x1xf32>
    %185 = vector.broadcast %184 : vector<8x1xf32> to vector<8x128xf32>
    %186 = vector.broadcast %cst_35 : f32 to vector<8x128xf32>
    %187 = arith.select %182, %185, %186 : vector<8x128xi1>, vector<8x128xf32>
    %188 = arith.addf %179, %187 : vector<8x128xf32>
    %189 = vector.extract_strided_slice %170 {offsets = [0, 1], sizes = [8, 1], strides = [1, 1]} : vector<8x8xi32> to vector<8x1xi32>
    %190 = vector.broadcast %189 : vector<8x1xi32> to vector<8x128xi32>
    %191 = arith.cmpi eq, %190, %178 : vector<8x128xi32>
    %192 = vector.extract_strided_slice %177 {offsets = [0, 1], sizes = [8, 1], strides = [1, 1]} : vector<8x8xf32> to vector<8x1xf32>
    %cst_36 = arith.constant 0.000000e+00 : f32
    %193 = vector.shape_cast %192 : vector<8x1xf32> to vector<8x1xf32>
    %194 = vector.broadcast %193 : vector<8x1xf32> to vector<8x128xf32>
    %195 = vector.broadcast %cst_36 : f32 to vector<8x128xf32>
    %196 = arith.select %191, %194, %195 : vector<8x128xi1>, vector<8x128xf32>
    %197 = arith.addf %188, %196 : vector<8x128xf32>
    %198 = vector.extract_strided_slice %170 {offsets = [0, 2], sizes = [8, 1], strides = [1, 1]} : vector<8x8xi32> to vector<8x1xi32>
    %199 = vector.broadcast %198 : vector<8x1xi32> to vector<8x128xi32>
    %200 = arith.cmpi eq, %199, %178 : vector<8x128xi32>
    %201 = vector.extract_strided_slice %177 {offsets = [0, 2], sizes = [8, 1], strides = [1, 1]} : vector<8x8xf32> to vector<8x1xf32>
    %cst_37 = arith.constant 0.000000e+00 : f32
    %202 = vector.shape_cast %201 : vector<8x1xf32> to vector<8x1xf32>
    %203 = vector.broadcast %202 : vector<8x1xf32> to vector<8x128xf32>
    %204 = vector.broadcast %cst_37 : f32 to vector<8x128xf32>
    %205 = arith.select %200, %203, %204 : vector<8x128xi1>, vector<8x128xf32>
    %206 = arith.addf %197, %205 : vector<8x128xf32>
    %207 = vector.extract_strided_slice %170 {offsets = [0, 3], sizes = [8, 1], strides = [1, 1]} : vector<8x8xi32> to vector<8x1xi32>
    %208 = vector.broadcast %207 : vector<8x1xi32> to vector<8x128xi32>
    %209 = arith.cmpi eq, %208, %178 : vector<8x128xi32>
    %210 = vector.extract_strided_slice %177 {offsets = [0, 3], sizes = [8, 1], strides = [1, 1]} : vector<8x8xf32> to vector<8x1xf32>
    %cst_38 = arith.constant 0.000000e+00 : f32
    %211 = vector.shape_cast %210 : vector<8x1xf32> to vector<8x1xf32>
    %212 = vector.broadcast %211 : vector<8x1xf32> to vector<8x128xf32>
    %213 = vector.broadcast %cst_38 : f32 to vector<8x128xf32>
    %214 = arith.select %209, %212, %213 : vector<8x128xi1>, vector<8x128xf32>
    %215 = arith.addf %206, %214 : vector<8x128xf32>
    %216 = vector.extract_strided_slice %170 {offsets = [0, 4], sizes = [8, 1], strides = [1, 1]} : vector<8x8xi32> to vector<8x1xi32>
    %217 = vector.broadcast %216 : vector<8x1xi32> to vector<8x128xi32>
    %218 = arith.cmpi eq, %217, %178 : vector<8x128xi32>
    %219 = vector.extract_strided_slice %177 {offsets = [0, 4], sizes = [8, 1], strides = [1, 1]} : vector<8x8xf32> to vector<8x1xf32>
    %cst_39 = arith.constant 0.000000e+00 : f32
    %220 = vector.shape_cast %219 : vector<8x1xf32> to vector<8x1xf32>
    %221 = vector.broadcast %220 : vector<8x1xf32> to vector<8x128xf32>
    %222 = vector.broadcast %cst_39 : f32 to vector<8x128xf32>
    %223 = arith.select %218, %221, %222 : vector<8x128xi1>, vector<8x128xf32>
    %224 = arith.addf %215, %223 : vector<8x128xf32>
    %225 = vector.extract_strided_slice %170 {offsets = [0, 5], sizes = [8, 1], strides = [1, 1]} : vector<8x8xi32> to vector<8x1xi32>
    %226 = vector.broadcast %225 : vector<8x1xi32> to vector<8x128xi32>
    %227 = arith.cmpi eq, %226, %178 : vector<8x128xi32>
    %228 = vector.extract_strided_slice %177 {offsets = [0, 5], sizes = [8, 1], strides = [1, 1]} : vector<8x8xf32> to vector<8x1xf32>
    %cst_40 = arith.constant 0.000000e+00 : f32
    %229 = vector.shape_cast %228 : vector<8x1xf32> to vector<8x1xf32>
    %230 = vector.broadcast %229 : vector<8x1xf32> to vector<8x128xf32>
    %231 = vector.broadcast %cst_40 : f32 to vector<8x128xf32>
    %232 = arith.select %227, %230, %231 : vector<8x128xi1>, vector<8x128xf32>
    %233 = arith.addf %224, %232 : vector<8x128xf32>
    %234 = vector.extract_strided_slice %170 {offsets = [0, 6], sizes = [8, 1], strides = [1, 1]} : vector<8x8xi32> to vector<8x1xi32>
    %235 = vector.broadcast %234 : vector<8x1xi32> to vector<8x128xi32>
    %236 = arith.cmpi eq, %235, %178 : vector<8x128xi32>
    %237 = vector.extract_strided_slice %177 {offsets = [0, 6], sizes = [8, 1], strides = [1, 1]} : vector<8x8xf32> to vector<8x1xf32>
    %cst_41 = arith.constant 0.000000e+00 : f32
    %238 = vector.shape_cast %237 : vector<8x1xf32> to vector<8x1xf32>
    %239 = vector.broadcast %238 : vector<8x1xf32> to vector<8x128xf32>
    %240 = vector.broadcast %cst_41 : f32 to vector<8x128xf32>
    %241 = arith.select %236, %239, %240 : vector<8x128xi1>, vector<8x128xf32>
    %242 = arith.addf %233, %241 : vector<8x128xf32>
    %243 = vector.extract_strided_slice %170 {offsets = [0, 7], sizes = [8, 1], strides = [1, 1]} : vector<8x8xi32> to vector<8x1xi32>
    %244 = vector.broadcast %243 : vector<8x1xi32> to vector<8x128xi32>
    %245 = arith.cmpi eq, %244, %178 : vector<8x128xi32>
    %246 = vector.extract_strided_slice %177 {offsets = [0, 7], sizes = [8, 1], strides = [1, 1]} : vector<8x8xf32> to vector<8x1xf32>
    %cst_42 = arith.constant 0.000000e+00 : f32
    %247 = vector.shape_cast %246 : vector<8x1xf32> to vector<8x1xf32>
    %248 = vector.broadcast %247 : vector<8x1xf32> to vector<8x128xf32>
    %249 = vector.broadcast %cst_42 : f32 to vector<8x128xf32>
    %250 = arith.select %245, %248, %249 : vector<8x128xi1>, vector<8x128xf32>
    %251 = arith.addf %242, %250 : vector<8x128xf32>
    %252 = tpu.concatenate %83, %166, %251 in 1 : vector<8x128xf32>, vector<8x256xf32>, vector<8x128xf32> -> vector<8x512xf32>
    %c0_43 = arith.constant 0 : index
    %c0_44 = arith.constant 0 : index
    %253 = vector.load %arg4[%c0_43, %c0_44] : memref<512x128xf32, #tpu.memory_space<vmem>>, vector<512x128xf32>
    %cst_45 = arith.constant dense<0.000000e+00> : vector<8x128xf32>
    %254 = tpu.matmul %252, %253, %cst_45 {dimension_numbers = #tpu.dot_dimension_numbers<[1], [0], [0], [1], [0, 0, 1, 1], [], []>} : vector<8x512xf32>, vector<512x128xf32>, vector<8x128xf32> -> vector<8x128xf32>
    %c0_46 = arith.constant 0 : index
    %c0_47 = arith.constant 0 : index
    %255 = vector.load %arg5[%c0_46, %c0_47] : memref<8x128xf32, #tpu.memory_space<vmem>>, vector<8x128xf32>
    tpu.vector_store %arg5[%c0_46, %c0_47], %254 {strides = array<i32>} : memref<8x128xf32, #tpu.memory_space<vmem>>, vector<8x128xf32>,
    return
  }
  func.func @transform_0(%arg0: i32) -> (i32, i32, i32) {
    %c0_i32 = arith.constant 0 : i32
    %c0_i32_0 = arith.constant 0 : i32
    %c0_i32_1 = arith.constant 0 : i32
    return %c0_i32, %arg0, %c0_i32_0 : i32, i32, i32
  }
  func.func @transform_1(%arg0: i32) -> (i32, i32) {
    %c0_i32 = arith.constant 0 : i32
    %c0_i32_0 = arith.constant 0 : i32
    return %arg0, %c0_i32 : i32, i32
  }
  func.func @transform_2(%arg0: i32) -> (i32, i32, i32) {
    %c0_i32 = arith.constant 0 : i32
    %c0_i32_0 = arith.constant 0 : i32
    %c0_i32_1 = arith.constant 0 : i32
    return %c0_i32, %arg0, %c0_i32_0 : i32, i32, i32
  }
  func.func @transform_3(%arg0: i32) -> (i32, i32) {
    %c0_i32 = arith.constant 0 : i32
    %c0_i32_0 = arith.constant 0 : i32
    %c0_i32_1 = arith.constant 0 : i32
    return %c0_i32, %c0_i32_0 : i32, i32
  }
  func.func @transform_4(%arg0: i32) -> (i32, i32) {
    %c0_i32 = arith.constant 0 : i32
    %c0_i32_0 = arith.constant 0 : i32
    return %arg0, %c0_i32 : i32, i32
  }
}

</mosaic_0001>

<llo_original>
// kernel: tpu_custom_call.1
$region0: #{tpu_custom_call.1}
  #allocation0 [shape = 'u32[]', space=smem, size = 0x4, offset = 0x4, fixed_abs, tag = 'smem constant byte address 0x4 - core index']
  #allocation1 [shape = 'u32[144,128]{1,0:T(1,128)}', space=vmem, size = 0x12000, scoped, tag = 'internal scratch']
  %s0 = inlined_call_operand.hbm [shape: s32[3,8,8], index: 0, kind: input, shape index: {}]
  %s1 = inlined_call_operand.vmem [shape: s32[8,3], index: 1, kind: input, shape index: {}]
  %s2 = inlined_call_operand.vmem [shape: f32[1,8,8], index: 2, kind: input, shape index: {}]
  %s3 = inlined_call_operand.hbm [shape: f32[512,128], index: 3, kind: input, shape index: {}]
  %s4 = inlined_call_operand.hbm [shape: f32[8,128], index: 4, kind: output, shape index: {}]
  %s5 = sld [smem:[#allocation0]]
  $region34: #{tpu_custom_call.1} parent=0
    _
  %s7 = ssub.s32 1, %s5
  %s8 = scalar_select 0, %s7, %s5
  $region1: #{tpu_custom_call.1} parent=0
    #allocation2 [shape = 'u8[12288]{0}', space=vmem, size = 0x3000, scoped, tag = 'input window, operand 0, single buffered']
    #allocation3 [shape = 's32[1]{0}', space=sflag, size = 0x4, scoped, tag = 'scoped memory for tpu_custom_call.1']
    #allocation4 [shape = 's32[1]{0}', space=sflag, size = 0x4, scoped, tag = 'scoped memory for tpu_custom_call.1']
    #allocation5 [shape = 'u8[262144]{0}', space=vmem, size = 0x40000, scoped, tag = 'input window, operand 3, single buffered']
    #allocation6 [shape = 's32[1]{0}', space=sflag, size = 0x4, scoped, tag = 'scoped memory for tpu_custom_call.1']
    #allocation7 [shape = 'u8[4096]{0}', space=vmem, size = 0x1000, scoped, tag = 'output window, operand 0, single buffered']
    %9 = vsyncpa [#allocation3], 0
    %10 = vsyncpa [#allocation6], 0
    %11 = vsyncpa [#allocation4], 0
    // Predicated region
    $region2: #{tpu_custom_call.1} parent=1 // pred_check
      _
    $region3: #{tpu_custom_call.1} parent=1 // pred_check_branch
      %13 = sbr.rel (0) target = $region5
    $region4: #{tpu_custom_call.1} parent=1 // pred_region
      %s15 = ssub.s32 384, 384
      %16 = vsyncadd [#allocation3], %s15
      %s17 = sshll.u32 [#allocation2], 4
      %s18 = int_to_ptr.vmem [resolvable:$true] %s17
      %23 = dma.hbm_to_vmem [thread:$0]  %s0, 384, %s18, [#allocation3], 128, 128, 8
    $region5: #{tpu_custom_call.1} parent=1 // pred_fallthru
      _
    // Predicated region
    $region6: #{tpu_custom_call.1} parent=1 // pred_check
      _
    $region7: #{tpu_custom_call.1} parent=1 // pred_check_branch
      %25 = sbr.rel (0) target = $region9
    $region8: #{tpu_custom_call.1} parent=1 // pred_region
      _
    $region9: #{tpu_custom_call.1} parent=1 // pred_fallthru
      _
    // Predicated region
    $region10: #{tpu_custom_call.1} parent=1 // pred_check
      _
    $region11: #{tpu_custom_call.1} parent=1 // pred_check_branch
      %27 = sbr.rel (0) target = $region13
    $region12: #{tpu_custom_call.1} parent=1 // pred_region
      _
    $region13: #{tpu_custom_call.1} parent=1 // pred_fallthru
      _
    // Predicated region
    $region14: #{tpu_custom_call.1} parent=1 // pred_check
      _
    $region15: #{tpu_custom_call.1} parent=1 // pred_check_branch
      %29 = sbr.rel (0) target = $region17
    $region16: #{tpu_custom_call.1} parent=1 // pred_region
      %s31 = ssub.s32 8192, 8192
      %32 = vsyncadd [#allocation6], %s31
      %s33 = sshll.u32 [#allocation5], 4
      %s34 = int_to_ptr.vmem [resolvable:$true] %s33
      %39 = dma.hbm_to_vmem [thread:$0]  %s3, 8192, %s34, [#allocation6], 128, 128, 8
    $region17: #{tpu_custom_call.1} parent=1 // pred_fallthru
      _
    // Predicated region
    $region18: #{tpu_custom_call.1} parent=1 // pred_check
      _
    $region19: #{tpu_custom_call.1} parent=1 // pred_check_branch
      %41 = sbr.rel (0) target = $region21
    $region20: #{tpu_custom_call.1} parent=1 // pred_region
      %42 = dma.done [#allocation3], 384
    $region21: #{tpu_custom_call.1} parent=1 // pred_fallthru
      _
    // Predicated region
    $region22: #{tpu_custom_call.1} parent=1 // pred_check
      _
    $region23: #{tpu_custom_call.1} parent=1 // pred_check_branch
      %44 = sbr.rel (0) target = $region25
    $region24: #{tpu_custom_call.1} parent=1 // pred_region
      %45 = dma.done [#allocation6], 8192
    $region25: #{tpu_custom_call.1} parent=1 // pred_fallthru
      _
    %v46 = vlaneseq
    %v47 = vand.u32 %v46, 127
    %v48 = vld [vmem:[#allocation2] sm:$0xff]
    %v49 = vand.u32 %v48, 127
    %v50 = vld [vmem:[%s1] sm:$0xff]
    %51 = vset.pattern.permute.xlu0 0
    %52 = vperm.xlu0 %51, %v50
    %v53 = vpop.permute.xlu0 %52
    %vm54 = vcmp.lt.s32.totalorder %v47, %v53
    %v55 = vsel %vm54, 1, 0
    %v56 = vcvt.s32.f32 %v55
    %57 = vset.pattern.permute.xlu0 0
    %58 = vperm.xlu0 %57, %v49
    %v59 = vpop.permute.xlu0 %58
    %vm60 = vcmp.eq.s32.totalorder %v59, %v47
    %62 = vset.pattern.permute.xlu0 0
    %63 = vperm.xlu0 %62, %v56
    %v64 = vpop.permute.xlu0 %63
    %v66 = vsel %vm60, %v64, 0.0
    %v67 = vadd.f32 %v66, 0.0
    %68 = vset.pattern.permute.xlu0 1
    %69 = vperm.xlu0 %68, %v49
    %v70 = vpop.permute.xlu0 %69
    %vm71 = vcmp.eq.s32.totalorder %v70, %v47
    %72 = vset.pattern.permute.xlu0 1
    %73 = vperm.xlu0 %72, %v56
    %v74 = vpop.permute.xlu0 %73
    %v76 = vsel %vm71, %v74, 0.0
    %v77 = vadd.f32 %v67, %v76
    %78 = vset.pattern.permute.xlu0 2
    %79 = vperm.xlu0 %78, %v49
    %v80 = vpop.permute.xlu0 %79
    %vm81 = vcmp.eq.s32.totalorder %v80, %v47
    %82 = vset.pattern.permute.xlu0 2
    %83 = vperm.xlu0 %82, %v56
    %v84 = vpop.permute.xlu0 %83
    %v86 = vsel %vm81, %v84, 0.0
    %v87 = vadd.f32 %v77, %v86
    %88 = vset.pattern.permute.xlu0 3
    %89 = vperm.xlu0 %88, %v49
    %v90 = vpop.permute.xlu0 %89
    %vm91 = vcmp.eq.s32.totalorder %v90, %v47
    %92 = vset.pattern.permute.xlu0 3
    %93 = vperm.xlu0 %92, %v56
    %v94 = vpop.permute.xlu0 %93
    %v96 = vsel %vm91, %v94, 0.0
    %v97 = vadd.f32 %v87, %v96
    %98 = vset.pattern.permute.xlu0 4
    %99 = vperm.xlu0 %98, %v49
    %v100 = vpop.permute.xlu0 %99
    %vm101 = vcmp.eq.s32.totalorder %v100, %v47
    %102 = vset.pattern.permute.xlu0 4
    %103 = vperm.xlu0 %102, %v56
    %v104 = vpop.permute.xlu0 %103
    %v106 = vsel %vm101, %v104, 0.0
    %v107 = vadd.f32 %v97, %v106
    %108 = vset.pattern.permute.xlu0 5
    %109 = vperm.xlu0 %108, %v49
    %v110 = vpop.permute.xlu0 %109
    %vm111 = vcmp.eq.s32.totalorder %v110, %v47
    %112 = vset.pattern.permute.xlu0 5
    %113 = vperm.xlu0 %112, %v56
    %v114 = vpop.permute.xlu0 %113
    %v116 = vsel %vm111, %v114, 0.0
    %v117 = vadd.f32 %v107, %v116
    %118 = vset.pattern.permute.xlu0 6
    %119 = vperm.xlu0 %118, %v49
    %v120 = vpop.permute.xlu0 %119
    %vm121 = vcmp.eq.s32.totalorder %v120, %v47
    %122 = vset.pattern.permute.xlu0 6
    %123 = vperm.xlu0 %122, %v56
    %v124 = vpop.permute.xlu0 %123
    %v126 = vsel %vm121, %v124, 0.0
    %v127 = vadd.f32 %v117, %v126
    %128 = vset.pattern.permute.xlu0 7
    %129 = vperm.xlu0 %128, %v49
    %v130 = vpop.permute.xlu0 %129
    %vm131 = vcmp.eq.s32.totalorder %v130, %v47
    %132 = vset.pattern.permute.xlu0 7
    %133 = vperm.xlu0 %132, %v56
    %v134 = vpop.permute.xlu0 %133
    %v136 = vsel %vm131, %v134, 0.0
    %v137 = vadd.f32 %v127, %v136
    %s138 = scalar_lea.vmem [#allocation2], 8
    %v139 = vld [vmem:[%s138] sm:$0xff]
    %v140 = vand.u32 %v139, 255
    %141 = vset.pattern.permute.xlu0 1
    %142 = vperm.xlu0 %141, %v50
    %v143 = vpop.permute.xlu0 %142
    %vm144 = vcmp.lt.s32.totalorder %v47, %v143
    %v145 = vsel %vm144, 1, 0
    %v146 = vcvt.s32.f32 %v145
    %v147 = vadd.s32 %v47, 128
    %148 = vset.pattern.permute.xlu0 0
    %149 = vperm.xlu0 %148, %v140
    %v150 = vpop.permute.xlu0 %149
    %vm151 = vcmp.eq.s32.totalorder %v150, %v47
    %vm152 = vcmp.eq.s32.totalorder %v150, %v147
    %154 = vset.pattern.permute.xlu0 0
    %155 = vperm.xlu0 %154, %v146
    %v156 = vpop.permute.xlu0 %155
    %v158 = vsel %vm151, %v156, 0.0
    %v159 = vsel %vm152, %v156, 0.0
    %v160 = vadd.f32 %v158, 0.0
    %v161 = vadd.f32 %v159, 0.0
    %162 = vset.pattern.permute.xlu0 1
    %163 = vperm.xlu0 %162, %v140
    %v164 = vpop.permute.xlu0 %163
    %vm165 = vcmp.eq.s32.totalorder %v164, %v47
    %vm166 = vcmp.eq.s32.totalorder %v164, %v147
    %167 = vset.pattern.permute.xlu0 1
    %168 = vperm.xlu0 %167, %v146
    %v169 = vpop.permute.xlu0 %168
    %v171 = vsel %vm165, %v169, 0.0
    %v172 = vsel %vm166, %v169, 0.0
    %v173 = vadd.f32 %v160, %v171
    %v174 = vadd.f32 %v161, %v172
    %175 = vset.pattern.permute.xlu0 2
    %176 = vperm.xlu0 %175, %v140
    %v177 = vpop.permute.xlu0 %176
    %vm178 = vcmp.eq.s32.totalorder %v177, %v47
    %vm179 = vcmp.eq.s32.totalorder %v177, %v147
    %180 = vset.pattern.permute.xlu0 2
    %181 = vperm.xlu0 %180, %v146
    %v182 = vpop.permute.xlu0 %181
    %v184 = vsel %vm178, %v182, 0.0
    %v185 = vsel %vm179, %v182, 0.0
    %v186 = vadd.f32 %v173, %v184
    %v187 = vadd.f32 %v174, %v185
    %188 = vset.pattern.permute.xlu0 3
    %189 = vperm.xlu0 %188, %v140
    %v190 = vpop.permute.xlu0 %189
    %vm191 = vcmp.eq.s32.totalorder %v190, %v47
    %vm192 = vcmp.eq.s32.totalorder %v190, %v147
    %193 = vset.pattern.permute.xlu0 3
    %194 = vperm.xlu0 %193, %v146
    %v195 = vpop.permute.xlu0 %194
    %v197 = vsel %vm191, %v195, 0.0
    %v198 = vsel %vm192, %v195, 0.0
    %v199 = vadd.f32 %v186, %v197
    %v200 = vadd.f32 %v187, %v198
    %201 = vset.pattern.permute.xlu0 4
    %202 = vperm.xlu0 %201, %v140
    %v203 = vpop.permute.xlu0 %202
    %vm204 = vcmp.eq.s32.totalorder %v203, %v47
    %vm205 = vcmp.eq.s32.totalorder %v203, %v147
    %206 = vset.pattern.permute.xlu0 4
    %207 = vperm.xlu0 %206, %v146
    %v208 = vpop.permute.xlu0 %207
    %v210 = vsel %vm204, %v208, 0.0
    %v211 = vsel %vm205, %v208, 0.0
    %v212 = vadd.f32 %v199, %v210
    %v213 = vadd.f32 %v200, %v211
    %214 = vset.pattern.permute.xlu0 5
    %215 = vperm.xlu0 %214, %v140
    %v216 = vpop.permute.xlu0 %215
    %vm217 = vcmp.eq.s32.totalorder %v216, %v47
    %vm218 = vcmp.eq.s32.totalorder %v216, %v147
    %219 = vset.pattern.permute.xlu0 5
    %220 = vperm.xlu0 %219, %v146
    %v221 = vpop.permute.xlu0 %220
    %v223 = vsel %vm217, %v221, 0.0
    %v224 = vsel %vm218, %v221, 0.0
    %v225 = vadd.f32 %v212, %v223
    %v226 = vadd.f32 %v213, %v224
    %227 = vset.pattern.permute.xlu0 6
    %228 = vperm.xlu0 %227, %v140
    %v229 = vpop.permute.xlu0 %228
    %vm230 = vcmp.eq.s32.totalorder %v229, %v47
    %vm231 = vcmp.eq.s32.totalorder %v229, %v147
    %232 = vset.pattern.permute.xlu0 6
    %233 = vperm.xlu0 %232, %v146
    %v234 = vpop.permute.xlu0 %233
    %v236 = vsel %vm230, %v234, 0.0
    %v237 = vsel %vm231, %v234, 0.0
    %v238 = vadd.f32 %v225, %v236
    %v239 = vadd.f32 %v226, %v237
    %240 = vset.pattern.permute.xlu0 7
    %241 = vperm.xlu0 %240, %v140
    %v242 = vpop.permute.xlu0 %241
    %vm243 = vcmp.eq.s32.totalorder %v242, %v47
    %vm244 = vcmp.eq.s32.totalorder %v242, %v147
    %245 = vset.pattern.permute.xlu0 7
    %246 = vperm.xlu0 %245, %v146
    %v247 = vpop.permute.xlu0 %246
    %v249 = vsel %vm243, %v247, 0.0
    %v250 = vsel %vm244, %v247, 0.0
    %v251 = vadd.f32 %v238, %v249
    %v252 = vadd.f32 %v239, %v250
    %s253 = scalar_lea.vmem [#allocation2], 16
    %v254 = vld [vmem:[%s253] sm:$0xff]
    %v255 = vand.u32 %v254, 127
    %256 = vset.pattern.permute.xlu0 2
    %257 = vperm.xlu0 %256, %v50
    %v258 = vpop.permute.xlu0 %257
    %vm259 = vcmp.lt.s32.totalorder %v47, %v258
    %v260 = vld [vmem:[%s2] sm:$0xff]
    %v261 = vsel %vm259, %v260, 0.0
    %262 = vset.pattern.permute.xlu0 0
    %263 = vperm.xlu0 %262, %v255
    %v264 = vpop.permute.xlu0 %263
    %vm265 = vcmp.eq.s32.totalorder %v264, %v47
    %267 = vset.pattern.permute.xlu0 0
    %268 = vperm.xlu0 %267, %v261
    %v269 = vpop.permute.xlu0 %268
    %v271 = vsel %vm265, %v269, 0.0
    %v272 = vadd.f32 %v271, 0.0
    %273 = vset.pattern.permute.xlu0 1
    %274 = vperm.xlu0 %273, %v255
    %v275 = vpop.permute.xlu0 %274
    %vm276 = vcmp.eq.s32.totalorder %v275, %v47
    %277 = vset.pattern.permute.xlu0 1
    %278 = vperm.xlu0 %277, %v261
    %v279 = vpop.permute.xlu0 %278
    %v281 = vsel %vm276, %v279, 0.0
    %v282 = vadd.f32 %v272, %v281
    %283 = vset.pattern.permute.xlu0 2
    %284 = vperm.xlu0 %283, %v255
    %v285 = vpop.permute.xlu0 %284
    %vm286 = vcmp.eq.s32.totalorder %v285, %v47
    %287 = vset.pattern.permute.xlu0 2
    %288 = vperm.xlu0 %287, %v261
    %v289 = vpop.permute.xlu0 %288
    %v291 = vsel %vm286, %v289, 0.0
    %v292 = vadd.f32 %v282, %v291
    %293 = vset.pattern.permute.xlu0 3
    %294 = vperm.xlu0 %293, %v255
    %v295 = vpop.permute.xlu0 %294
    %vm296 = vcmp.eq.s32.totalorder %v295, %v47
    %297 = vset.pattern.permute.xlu0 3
    %298 = vperm.xlu0 %297, %v261
    %v299 = vpop.permute.xlu0 %298
    %v301 = vsel %vm296, %v299, 0.0
    %v302 = vadd.f32 %v292, %v301
    %303 = vset.pattern.permute.xlu0 4
    %304 = vperm.xlu0 %303, %v255
    %v305 = vpop.permute.xlu0 %304
    %vm306 = vcmp.eq.s32.totalorder %v305, %v47
    %307 = vset.pattern.permute.xlu0 4
    %308 = vperm.xlu0 %307, %v261
    %v309 = vpop.permute.xlu0 %308
    %v311 = vsel %vm306, %v309, 0.0
    %v312 = vadd.f32 %v302, %v311
    %313 = vset.pattern.permute.xlu0 5
    %314 = vperm.xlu0 %313, %v255
    %v315 = vpop.permute.xlu0 %314
    %vm316 = vcmp.eq.s32.totalorder %v315, %v47
    %317 = vset.pattern.permute.xlu0 5
    %318 = vperm.xlu0 %317, %v261
    %v319 = vpop.permute.xlu0 %318
    %v321 = vsel %vm316, %v319, 0.0
    %v322 = vadd.f32 %v312, %v321
    %323 = vset.pattern.permute.xlu0 6
    %324 = vperm.xlu0 %323, %v255
    %v325 = vpop.permute.xlu0 %324
    %vm326 = vcmp.eq.s32.totalorder %v325, %v47
    %327 = vset.pattern.permute.xlu0 6
    %328 = vperm.xlu0 %327, %v261
    %v329 = vpop.permute.xlu0 %328
    %v331 = vsel %vm326, %v329, 0.0
    %v332 = vadd.f32 %v322, %v331
    %333 = vset.pattern.permute.xlu0 7
    %334 = vperm.xlu0 %333, %v255
    %v335 = vpop.permute.xlu0 %334
    %vm336 = vcmp.eq.s32.totalorder %v335, %v47
    %337 = vset.pattern.permute.xlu0 7
    %338 = vperm.xlu0 %337, %v261
    %v339 = vpop.permute.xlu0 %338
    %v341 = vsel %vm336, %v339, 0.0
    %v342 = vadd.f32 %v332, %v341
    %v343 = vld [vmem:[#allocation5] sm:$0xff]
    %v344 = vld [vmem:[#allocation5 + $0x8] sm:$0xff]
    %v345 = vld [vmem:[#allocation5 + $0x10] sm:$0xff]
    %v346 = vld [vmem:[#allocation5 + $0x18] sm:$0xff]
    %v347 = vld [vmem:[#allocation5 + $0x20] sm:$0xff]
    %v348 = vld [vmem:[#allocation5 + $0x28] sm:$0xff]
    %v349 = vld [vmem:[#allocation5 + $0x30] sm:$0xff]
    %v350 = vld [vmem:[#allocation5 + $0x38] sm:$0xff]
    %v351 = vld [vmem:[#allocation5 + $0x40] sm:$0xff]
    %v352 = vld [vmem:[#allocation5 + $0x48] sm:$0xff]
    %v353 = vld [vmem:[#allocation5 + $0x50] sm:$0xff]
    %v354 = vld [vmem:[#allocation5 + $0x58] sm:$0xff]
    %v355 = vld [vmem:[#allocation5 + $0x60] sm:$0xff]
    %v356 = vld [vmem:[#allocation5 + $0x68] sm:$0xff]
    %v357 = vld [vmem:[#allocation5 + $0x70] sm:$0xff]
    %v358 = vld [vmem:[#allocation5 + $0x78] sm:$0xff]
    %v359 = vld [vmem:[#allocation5 + $0x80] sm:$0xff]
    %v360 = vld [vmem:[#allocation5 + $0x88] sm:$0xff]
    %v361 = vld [vmem:[#allocation5 + $0x90] sm:$0xff]
    %v362 = vld [vmem:[#allocation5 + $0x98] sm:$0xff]
    %v363 = vld [vmem:[#allocation5 + $0xa0] sm:$0xff]
    %v364 = vld [vmem:[#allocation5 + $0xa8] sm:$0xff]
    %v365 = vld [vmem:[#allocation5 + $0xb0] sm:$0xff]
    %v366 = vld [vmem:[#allocation5 + $0xb8] sm:$0xff]
    %v367 = vld [vmem:[#allocation5 + $0xc0] sm:$0xff]
    %v368 = vld [vmem:[#allocation5 + $0xc8] sm:$0xff]
    %v369 = vld [vmem:[#allocation5 + $0xd0] sm:$0xff]
    %v370 = vld [vmem:[#allocation5 + $0xd8] sm:$0xff]
    %v371 = vld [vmem:[#allocation5 + $0xe0] sm:$0xff]
    %v372 = vld [vmem:[#allocation5 + $0xe8] sm:$0xff]
    %v373 = vld [vmem:[#allocation5 + $0xf0] sm:$0xff]
    %v374 = vld [vmem:[#allocation5 + $0xf8] sm:$0xff]
    %v375 = vld [vmem:[#allocation5 + $0x100] sm:$0xff]
    %v376 = vld [vmem:[#allocation5 + $0x108] sm:$0xff]
    %v377 = vld [vmem:[#allocation5 + $0x110] sm:$0xff]
    %v378 = vld [vmem:[#allocation5 + $0x118] sm:$0xff]
    %v379 = vld [vmem:[#allocation5 + $0x120] sm:$0xff]
    %v380 = vld [vmem:[#allocation5 + $0x128] sm:$0xff]
    %v381 = vld [vmem:[#allocation5 + $0x130] sm:$0xff]
    %v382 = vld [vmem:[#allocation5 + $0x138] sm:$0xff]
    %v383 = vld [vmem:[#allocation5 + $0x140] sm:$0xff]
    %v384 = vld [vmem:[#allocation5 + $0x148] sm:$0xff]
    %v385 = vld [vmem:[#allocation5 + $0x150] sm:$0xff]
    %v386 = vld [vmem:[#allocation5 + $0x158] sm:$0xff]
    %v387 = vld [vmem:[#allocation5 + $0x160] sm:$0xff]
    %v388 = vld [vmem:[#allocation5 + $0x168] sm:$0xff]
    %v389 = vld [vmem:[#allocation5 + $0x170] sm:$0xff]
    %v390 = vld [vmem:[#allocation5 + $0x178] sm:$0xff]
    %v391 = vld [vmem:[#allocation5 + $0x180] sm:$0xff]
    %v392 = vld [vmem:[#allocation5 + $0x188] sm:$0xff]
    %v393 = vld [vmem:[#allocation5 + $0x190] sm:$0xff]
    %v394 = vld [vmem:[#allocation5 + $0x198] sm:$0xff]
    %v395 = vld [vmem:[#allocation5 + $0x1a0] sm:$0xff]
    %v396 = vld [vmem:[#allocation5 + $0x1a8] sm:$0xff]
    %v397 = vld [vmem:[#allocation5 + $0x1b0] sm:$0xff]
    %v398 = vld [vmem:[#allocation5 + $0x1b8] sm:$0xff]
    %v399 = vld [vmem:[#allocation5 + $0x1c0] sm:$0xff]
    %v400 = vld [vmem:[#allocation5 + $0x1c8] sm:$0xff]
    %v401 = vld [vmem:[#allocation5 + $0x1d0] sm:$0xff]
    %v402 = vld [vmem:[#allocation5 + $0x1d8] sm:$0xff]
    %v403 = vld [vmem:[#allocation5 + $0x1e0] sm:$0xff]
    %v404 = vld [vmem:[#allocation5 + $0x1e8] sm:$0xff]
    %v405 = vld [vmem:[#allocation5 + $0x1f0] sm:$0xff]
    %v406 = vld [vmem:[#allocation5 + $0x1f8] sm:$0xff]
    %407 = vmatprep.subr.mxu0 0.0
    %408 = vmatpush1.msra.mxu0 %v343
    %409 = vmatprep.subr.mxu0 0.0
    %410 = vmatpush1.msra.mxu0 %v344
    %411 = vmatprep.subr.mxu0 0.0
    %412 = vmatpush1.msra.mxu0 %v345
    %413 = vmatprep.subr.mxu0 0.0
    %414 = vmatpush1.msra.mxu0 %v346
    %415 = vmatprep.subr.mxu0 0.0
    %416 = vmatpush1.msra.mxu0 %v347
    %417 = vmatprep.subr.mxu0 0.0
    %418 = vmatpush1.msra.mxu0 %v348
    %419 = vmatprep.subr.mxu0 0.0
    %420 = vmatpush1.msra.mxu0 %v349
    %421 = vmatprep.subr.mxu0 0.0
    %422 = vmatpush1.msra.mxu0 %v350
    %423 = vmatprep.subr.mxu0 0.0
    %424 = vmatpush1.msra.mxu0 %v351
    %425 = vmatprep.subr.mxu0 0.0
    %426 = vmatpush1.msra.mxu0 %v352
    %427 = vmatprep.subr.mxu0 0.0
    %428 = vmatpush1.msra.mxu0 %v353
    %429 = vmatprep.subr.mxu0 0.0
    %430 = vmatpush1.msra.mxu0 %v354
    %431 = vmatprep.subr.mxu0 0.0
    %432 = vmatpush1.msra.mxu0 %v355
    %433 = vmatprep.subr.mxu0 0.0
    %434 = vmatpush1.msra.mxu0 %v356
    %435 = vmatprep.subr.mxu0 0.0
    %436 = vmatpush1.msra.mxu0 %v357
    %437 = vmatprep.subr.mxu0 0.0
    %438 = vmatpush1.msra.mxu0 %v358
    %439 = vmatprep.subr.mxu0 0.0
    %440 = vmatpush1.msra.mxu0 %v359
    %441 = vmatprep.subr.mxu0 0.0
    %442 = vmatpush1.msra.mxu0 %v360
    %443 = vmatprep.subr.mxu0 0.0
    %444 = vmatpush1.msra.mxu0 %v361
    %445 = vmatprep.subr.mxu0 0.0
    %446 = vmatpush1.msra.mxu0 %v362
    %447 = vmatprep.subr.mxu0 0.0
    %448 = vmatpush1.msra.mxu0 %v363
    %449 = vmatprep.subr.mxu0 0.0
    %450 = vmatpush1.msra.mxu0 %v364
    %451 = vmatprep.subr.mxu0 0.0
    %452 = vmatpush1.msra.mxu0 %v365
    %453 = vmatprep.subr.mxu0 0.0
    %454 = vmatpush1.msra.mxu0 %v366
    %455 = vmatprep.subr.mxu0 0.0
    %456 = vmatpush1.msra.mxu0 %v367
    %457 = vmatprep.subr.mxu0 0.0
    %458 = vmatpush1.msra.mxu0 %v368
    %459 = vmatprep.subr.mxu0 0.0
    %460 = vmatpush1.msra.mxu0 %v369
    %461 = vmatprep.subr.mxu0 0.0
    %462 = vmatpush1.msra.mxu0 %v370
    %463 = vmatprep.subr.mxu0 0.0
    %464 = vmatpush1.msra.mxu0 %v371
    %465 = vmatprep.subr.mxu0 0.0
    %466 = vmatpush1.msra.mxu0 %v372
    %467 = vmatprep.subr.mxu0 0.0
    %468 = vmatpush1.msra.mxu0 %v373
    %469 = vmatprep.subr.mxu0 0.0
    %470 = vmatpush1.msra.mxu0 %v374
    %471 = vmatprep.mubr.f32.mxu0 %v251
    %472 = vmatmul.mubr.f32.gmra.mrb[0].mxu0 %v137
    %v473 = vpop.f32.mrb[0].mxu0
    %v474 = vadd.f32 0.0, %v473
    %v475 = vpop.f32.mrb[0].mxu0
    %476 = vdwg.mxu0
    %477 = vmatprep.subr.mxu0 0.0
    %478 = vmatpush1.msra.mxu0 %v375
    %479 = vmatprep.subr.mxu0 0.0
    %480 = vmatpush1.msra.mxu0 %v376
    %481 = vmatprep.subr.mxu0 0.0
    %482 = vmatpush1.msra.mxu0 %v377
    %483 = vmatprep.subr.mxu0 0.0
    %484 = vmatpush1.msra.mxu0 %v378
    %485 = vmatprep.subr.mxu0 0.0
    %486 = vmatpush1.msra.mxu0 %v379
    %487 = vmatprep.subr.mxu0 0.0
    %488 = vmatpush1.msra.mxu0 %v380
    %489 = vmatprep.subr.mxu0 0.0
    %490 = vmatpush1.msra.mxu0 %v381
    %491 = vmatprep.subr.mxu0 0.0
    %492 = vmatpush1.msra.mxu0 %v382
    %493 = vmatprep.subr.mxu0 0.0
    %494 = vmatpush1.msra.mxu0 %v383
    %495 = vmatprep.subr.mxu0 0.0
    %496 = vmatpush1.msra.mxu0 %v384
    %497 = vmatprep.subr.mxu0 0.0
    %498 = vmatpush1.msra.mxu0 %v385
    %499 = vmatprep.subr.mxu0 0.0
    %500 = vmatpush1.msra.mxu0 %v386
    %501 = vmatprep.subr.mxu0 0.0
    %502 = vmatpush1.msra.mxu0 %v387
    %503 = vmatprep.subr.mxu0 0.0
    %504 = vmatpush1.msra.mxu0 %v388
    %505 = vmatprep.subr.mxu0 0.0
    %506 = vmatpush1.msra.mxu0 %v389
    %507 = vmatprep.subr.mxu0 0.0
    %508 = vmatpush1.msra.mxu0 %v390
    %509 = vmatprep.subr.mxu0 0.0
    %510 = vmatpush1.msra.mxu0 %v391
    %511 = vmatprep.subr.mxu0 0.0
    %512 = vmatpush1.msra.mxu0 %v392
    %513 = vmatprep.subr.mxu0 0.0
    %514 = vmatpush1.msra.mxu0 %v393
    %515 = vmatprep.subr.mxu0 0.0
    %516 = vmatpush1.msra.mxu0 %v394
    %517 = vmatprep.subr.mxu0 0.0
    %518 = vmatpush1.msra.mxu0 %v395
    %519 = vmatprep.subr.mxu0 0.0
    %520 = vmatpush1.msra.mxu0 %v396
    %521 = vmatprep.subr.mxu0 0.0
    %522 = vmatpush1.msra.mxu0 %v397
    %523 = vmatprep.subr.mxu0 0.0
    %524 = vmatpush1.msra.mxu0 %v398
    %525 = vmatprep.subr.mxu0 0.0
    %526 = vmatpush1.msra.mxu0 %v399
    %527 = vmatprep.subr.mxu0 0.0
    %528 = vmatpush1.msra.mxu0 %v400
    %529 = vmatprep.subr.mxu0 0.0
    %530 = vmatpush1.msra.mxu0 %v401
    %531 = vmatprep.subr.mxu0 0.0
    %532 = vmatpush1.msra.mxu0 %v402
    %533 = vmatprep.subr.mxu0 0.0
    %534 = vmatpush1.msra.mxu0 %v403
    %535 = vmatprep.subr.mxu0 0.0
    %536 = vmatpush1.msra.mxu0 %v404
    %537 = vmatprep.subr.mxu0 0.0
    %538 = vmatpush1.msra.mxu0 %v405
    %539 = vmatprep.subr.mxu0 0.0
    %540 = vmatpush1.msra.mxu0 %v406
    %541 = vmatprep.mubr.f32.mxu0 %v342
    %542 = vmatmul.mubr.f32.gmra.mrb[0].mxu0 %v252
    %v543 = vpop.f32.mrb[0].mxu0
    %v544 = vadd.f32 %v474, %v543
    %v545 = vpop.f32.mrb[0].mxu0
    %546 = vdwg.mxu0
    %547 = vst [vmem:[#allocation7] sm:$0xff] %v544
    // Predicated region
    $region26: #{tpu_custom_call.1} parent=1 // pred_check
      _
    $region27: #{tpu_custom_call.1} parent=1 // pred_check_branch
      %549 = sbr.rel (0) target = $region29
    $region28: #{tpu_custom_call.1} parent=1 // pred_region
      %s551 = ssub.s32 128, 128
      %552 = vsyncadd [#allocation4], %s551
      %s554 = sshll.u32 [#allocation7], 4
      %s555 = int_to_ptr.vmem [resolvable:$true] %s554
      %557 = dma.vmem_to_hbm [thread:$0]  %s555, 128, %s4, [#allocation4]
    $region29: #{tpu_custom_call.1} parent=1 // pred_fallthru
      _
    // Predicated region
    $region30: #{tpu_custom_call.1} parent=1 // pred_check
      _
    $region31: #{tpu_custom_call.1} parent=1 // pred_check_branch
      %559 = sbr.rel (0) target = $region33
    $region32: #{tpu_custom_call.1} parent=1 // pred_region
      %560 = dma.done [#allocation4], 128
    $region33: #{tpu_custom_call.1} parent=1 // pred_fallthru
      _
    %561 = vsyncpa [#allocation3], 1
    %562 = vsyncpa [#allocation6], 1
    %563 = vsyncpa [#allocation4], 1

</llo_original>
